<compile_context>
chip_gen: v6e
topology: v6e:2x2x1
jax: 0.10.0
libtpu: 0.0.40
codegen_flags: <defaults>
</compile_context>

<pallas_src>
import functools

import numpy as np
import jax
import jax.numpy as jnp
from jax.experimental import pallas as pl
from jax.experimental.pallas import tpu as pltpu


# --------------------------------------------------------------------------------------
# Pallas kernels
# --------------------------------------------------------------------------------------

def _relative_kernel(x_ref, wemb_ref, bemb_ref, w1_ref, b1_ref, w2_ref, b2_ref,
                     o_ref, *, nm, t, c4):
    # x_ref: (NM*T, V, C) raw input, channels-last, batch-major rows (b*T + t).
    # AvgPool2d((1, V)) commutes with the 1x1 embedding conv -> pool first (tiny).
    pooled = jnp.mean(x_ref[...], axis=1)                                    # (NM*T, C)
    emb = jnp.dot(pooled, wemb_ref[...],
                  preferred_element_type=jnp.float32) + bemb_ref[...]        # (NM*T, Cin)
    f1 = (jnp.dot(emb, w1_ref[...], preferred_element_type=jnp.float32)
          + b1_ref[...]).reshape(nm, t, c4)
    f2 = (jnp.dot(emb, w2_ref[...], preferred_element_type=jnp.float32)
          + b2_ref[...]).reshape(nm, t, c4)
    # torch.matmul(f1, f2^T) per (b, c) is an outer product over t; mean over b and c:
    g = jnp.einsum('bic,bjc->bij', f1, f2, preferred_element_type=jnp.float32)
    g = jnp.sum(g, axis=0) * (1.0 / (nm * c4))                               # (T, T)
    m = jnp.max(g, axis=-1, keepdims=True)
    e = jnp.exp(g - m)
    o_ref[...] = e * pl.reciprocal(jnp.sum(e, axis=-1, keepdims=True), approx=True)


def _input_head_kernel(x_ref, w_ref, b_ref, wfc_ref, bfc_ref, o_ref, acc_ref):
    # Fused input_map (1x1 conv + folded BN + LeakyReLU) + head (mean over rows + fc).
    # x_ref: (1, tile_rows, C) bf16; w_ref: (C, Cin) bf16 (BN scale folded in);
    # wfc_ref: (Cout, num_classes) f32 with the 1/rows mean folded in.
    r = pl.program_id(1)

    @pl.when(r == 0)
    def _():
        acc_ref[...] = jnp.zeros_like(acc_ref)

    xb = x_ref[0]                                                            # (tile, C)
    y = jnp.dot(xb, w_ref[...], preferred_element_type=jnp.float32) + b_ref[...]
    y = jnp.where(y > 0, y, 0.1 * y)                                         # f32 epilogue
    acc_ref[...] += jnp.sum(y, axis=0, keepdims=True)                        # (1, Cin)

    @pl.when(r == pl.num_programs(1) - 1)
    def _():
        o_ref[0] = (jnp.dot(acc_ref[...], wfc_ref[...],
                            preferred_element_type=jnp.float32) + bfc_ref[...])


# --------------------------------------------------------------------------------------
# pallas_call helpers
# --------------------------------------------------------------------------------------

def _whole(shape):
    nd = len(shape)
    return pl.BlockSpec(shape, lambda i, _nd=nd: (0,) * _nd)


def run_full(kernel, args, out_shape):
    # Single-step whole-array call; only used for the inherently small relative map.
    return pl.pallas_call(
        kernel,
        out_shape=out_shape,
        grid=(1,),
        in_specs=[_whole(a.shape) for a in args],
        out_specs=_whole(out_shape.shape),
        compiler_params=pltpu.CompilerParams(dimension_semantics=("arbitrary",)),
    )(*args)


def _pick_row_tile(rows):
    # Largest bf16-sublane-aligned tile that divides `rows`; conservative enough that
    # double-buffered input tiles stay far below v7x's 64 MiB VMEM.
    for t in (2048, 1024, 512, 256, 128, 64, 32, 16):
        if rows % t == 0:
            return t
    return rows  # full extent (always a valid block)


# --------------------------------------------------------------------------------------
# Parameter initialization (matching the __init__ shapes / init fns, channels-last)
# --------------------------------------------------------------------------------------

def init_params(key, num_classes, num_channels, in_channels, out_channels):
    c4 = in_channels // 4
    ks = jax.random.split(key, 6)

    def kaiming_fan_out(k, cin, cout):
        std = np.sqrt(2.0 / cout)
        return std * jax.random.normal(k, (cin, cout), jnp.float32)

    def xavier(k, cin, cout):
        std = np.sqrt(2.0 / (cin + cout))
        return std * jax.random.normal(k, (cin, cout), jnp.float32)

    eps = 1e-5
    return {
        # get_relative_map
        "w_emb": kaiming_fan_out(ks[0], num_classes, in_channels),
        "b_emb": jnp.zeros((1, in_channels), jnp.float32),
        "w1": kaiming_fan_out(ks[1], in_channels, c4),
        "b1": jnp.zeros((1, c4), jnp.float32),
        "w2": kaiming_fan_out(ks[2], in_channels, c4),
        "b2": jnp.zeros((1, c4), jnp.float32),
        # input_map: Conv2d + BatchNorm2d(eval) + LeakyReLU(0.1)
        "w_in": kaiming_fan_out(ks[3], num_channels, in_channels),
        "b_in": jnp.zeros((1, in_channels), jnp.float32),
        "bn_scale": jnp.full((1, in_channels), 1.0 / np.sqrt(1.0 + eps), jnp.float32),
        "bn_shift": jnp.zeros((1, in_channels), jnp.float32),
        # fc
        "w_fc": xavier(ks[4], out_channels, num_classes),
        "b_fc": jnp.zeros((1, num_classes), jnp.float32),
    }


# --------------------------------------------------------------------------------------
# Host-side greedy frame grouping (data-dependent control flow, as in the reference)
# --------------------------------------------------------------------------------------

def _greedy_group(rel, T, len_parts):
    cap = T // len_parts
    groups = [[i] for i in range(len_parts)]
    for i in range(len_parts, T):
        best, best_j = -float("inf"), -1
        for j in range(len_parts):
            if len(groups[j]) == cap:
                continue
            s = 0.0
            for k in groups[j]:
                s += float(rel[i][k] + rel[k][i])
            if s > best:
                best, best_j = s, j
        groups[best_j].append(i)
    return np.asarray(groups, dtype=np.int32).reshape(-1)


# --------------------------------------------------------------------------------------
# Forward pass
# --------------------------------------------------------------------------------------

def model_forward(params, x, *, len_parts, num_classes, in_channels, out_channels):
    N, C, T, V, M = x.shape
    NM = N * M
    c4 = in_channels // 4
    rows_per_n = M * T * V
    # GAT blocks are identity here, so the fc consumes the input_map channels directly.
    assert in_channels == out_channels, "identity GAT blocks require in == out channels"

    # Channels-last views of the raw input (single cheap XLA transpose each).
    x_nmtvc = jnp.transpose(x, (0, 4, 2, 3, 1))                 # (N, M, T, V, C)
    x_rel = x_nmtvc.reshape(NM * T, V, C)                       # f32, batch-major rows
    x_cl = x_nmtvc.reshape(N, rows_per_n, C).astype(jnp.bfloat16)

    # Fold BN into the conv (w' = w*scale, b' = b*scale + shift) and the head mean
    # divisor into the fc weight.
    w_in_f = (params["w_in"] * params["bn_scale"]).astype(jnp.bfloat16)
    b_in_f = params["b_in"] * params["bn_scale"] + params["bn_shift"]
    w_fc_s = params["w_fc"] * (1.0 / rows_per_n)

    # ---- stage 1: fused embedding + AvgPool(V) + f1/f2 + gram + softmax -------------
    relative = run_full(
        functools.partial(_relative_kernel, nm=NM, t=T, c4=c4),
        [x_rel, params["w_emb"], params["b_emb"],
         params["w1"], params["b1"], params["w2"], params["b2"]],
        jax.ShapeDtypeStruct((T, T), jnp.float32),
    )

    # ---- stage 2: fused input_map + head (launched before syncing on `relative`) ----
    # The conv is pointwise in (T, V) and the head mean reduces over all (M, T, V)
    # rows per sample, so the frame-regrouping permutation does not change the output
    # while the GAT blocks are identity -> the host grouping loop below overlaps with
    # this kernel's execution instead of stalling the device.
    tile = _pick_row_tile(rows_per_n)
    R = rows_per_n // tile
    out = pl.pallas_call(
        _input_head_kernel,
        out_shape=jax.ShapeDtypeStruct((N, 1, num_classes), jnp.float32),
        grid=(N, R),
        in_specs=[
            pl.BlockSpec((1, tile, C), lambda n, r: (n, r, 0)),            # x rows
            pl.BlockSpec((C, in_channels), lambda n, r: (0, 0)),           # w_in (bf16)
            pl.BlockSpec((1, in_channels), lambda n, r: (0, 0)),           # b_in (f32)
            pl.BlockSpec((out_channels, num_classes), lambda n, r: (0, 0)),  # w_fc/rows
            pl.BlockSpec((1, num_classes), lambda n, r: (0, 0)),           # b_fc
        ],
        out_specs=pl.BlockSpec((1, 1, num_classes), lambda n, r: (n, 0, 0)),
        scratch_shapes=[pltpu.VMEM((1, in_channels), jnp.float32)],
        compiler_params=pltpu.CompilerParams(
            dimension_semantics=("parallel", "arbitrary")),
    )(x_cl, w_in_f, b_in_f, w_fc_s, params["b_fc"])[:, 0, :]

    # ---- stage 3 (host, overlapped with stage 2): greedy frame grouping -------------
    rel_np = np.asarray(jax.device_get(relative))
    index = _greedy_group(rel_np, T, len_parts)
    assert index.shape == (T,)
    # TODO(synk): when GAT_Block is implemented, apply the `index` frame gather before
    # the blocks (e.g. as a PrefetchScalarGridSpec row-gather in the stage-2 index_map).

    return out


# --------------------------------------------------------------------------------------
# Pure-JAX reference (identical math, emulating the bf16 quantization of stage 2)
# --------------------------------------------------------------------------------------

def reference_forward(params, x, *, num_classes, in_channels, out_channels):
    N, C, T, V, M = x.shape
    NM = N * M
    c4 = in_channels // 4
    x_nmtvc = jnp.transpose(x, (0, 4, 2, 3, 1))
    # relative map
    pooled = jnp.mean(x_nmtvc.reshape(NM * T, V, C), axis=1)
    emb = pooled @ params["w_emb"] + params["b_emb"]
    f1 = (emb @ params["w1"] + params["b1"]).reshape(NM, T, c4)
    f2 = (emb @ params["w2"] + params["b2"]).reshape(NM, T, c4)
    g = jnp.einsum('bic,bjc->bij', f1, f2).sum(0) / (NM * c4)
    rel = jax.nn.softmax(g, axis=-1)
    # input_map + head (same bf16 quantization of operands as the kernel path)
    rows = M * T * V
    w_in_f = (params["w_in"] * params["bn_scale"]).astype(jnp.bfloat16).astype(jnp.float32)
    b_in_f = params["b_in"] * params["bn_scale"] + params["bn_shift"]
    xq = x_nmtvc.reshape(N, rows, C).astype(jnp.bfloat16).astype(jnp.float32)
    y = xq @ w_in_f + b_in_f
    y = jnp.where(y > 0, y, 0.1 * y)
    feat = jnp.mean(y, axis=1)
    return rel, feat @ params["w_fc"] + params["b_fc"]


# --------------------------------------------------------------------------------------
# main
# --------------------------------------------------------------------------------------

if __name__ == "__main__":
    N, M = 2, 2                 # batch, persons
    num_channels = 4            # C (== num_classes so the relative embedding is typed)
    num_classes = 4
    T, V = 8, 8                 # frames, joints
    len_parts = 2
    config = [[32, 32, 8]]      # (in_channels, out_channels, qkv_dim)
    in_channels = config[0][0]
    out_channels = config[-1][1]

    key = jax.random.PRNGKey(0)
    kp, kx = jax.random.split(key)
    params = init_params(kp, num_classes, num_channels, in_channels, out_channels)
    x = jax.random.normal(kx, (N, num_channels, T, V, M), jnp.float32)

    out = model_forward(
        params, x,
        len_parts=len_parts, num_classes=num_classes,
        in_channels=in_channels, out_channels=out_channels,
    )
    out = jax.block_until_ready(out)
    assert out.shape == (N, num_classes), out.shape
    assert bool(jnp.all(jnp.isfinite(out)))

    # Numerical check against the pure-JAX reference (loose: bf16 MXU + approx recip).
    _, out_ref = reference_forward(
        params, x, num_classes=num_classes,
        in_channels=in_channels, out_channels=out_channels,
    )
    np.testing.assert_allclose(np.asarray(out), np.asarray(out_ref), rtol=5e-2, atol=5e-3)

    print("KERNEL_OK")
</pallas_src>

<mosaic_0001>
module attributes {stable_mosaic.version = 11 : i64} {
  func.func @_relative_kernel(%arg0: i32, %arg1: memref<32x8x4xf32, #tpu.memory_space<vmem>>, %arg2: memref<4x32xf32, #tpu.memory_space<vmem>>, %arg3: memref<1x32xf32, #tpu.memory_space<vmem>>, %arg4: memref<32x8xf32, #tpu.memory_space<vmem>>, %arg5: memref<1x8xf32, #tpu.memory_space<vmem>>, %arg6: memref<32x8xf32, #tpu.memory_space<vmem>>, %arg7: memref<1x8xf32, #tpu.memory_space<vmem>>, %arg8: memref<8x8xf32, #tpu.memory_space<vmem>>) attributes {dimension_semantics = [#tpu.dimension_semantics<arbitrary>], iteration_bounds = array<i64: 1>, scalar_prefetch = 0 : i64, scratch_operands = 0 : i64, tpu.core_type = #tpu.core_type<tc>, window_params = [{pipeline_mode = #tpu.pipeline_mode<synchronous>, transform_indices = @transform_0, window_bounds = array<i64: 32, 8, 4>}, {pipeline_mode = #tpu.pipeline_mode<synchronous>, transform_indices = @transform_1, window_bounds = array<i64: 4, 32>}, {pipeline_mode = #tpu.pipeline_mode<synchronous>, transform_indices = @transform_2, window_bounds = array<i64: 1, 32>}, {pipeline_mode = #tpu.pipeline_mode<synchronous>, transform_indices = @transform_3, window_bounds = array<i64: 32, 8>}, {pipeline_mode = #tpu.pipeline_mode<synchronous>, transform_indices = @transform_4, window_bounds = array<i64: 1, 8>}, {pipeline_mode = #tpu.pipeline_mode<synchronous>, transform_indices = @transform_5, window_bounds = array<i64: 32, 8>}, {pipeline_mode = #tpu.pipeline_mode<synchronous>, transform_indices = @transform_6, window_bounds = array<i64: 1, 8>}, {pipeline_mode = #tpu.pipeline_mode<synchronous>, transform_indices = @transform_7, window_bounds = array<i64: 8, 8>}]} {
    %c0 = arith.constant 0 : index
    %c0_0 = arith.constant 0 : index
    %c0_1 = arith.constant 0 : index
    %0 = vector.load %arg1[%c0, %c0_0, %c0_1] : memref<32x8x4xf32, #tpu.memory_space<vmem>>, vector<32x8x4xf32>
    %cst = arith.constant dense<0.000000e+00> : vector<32x4xf32>
    %1 = vector.multi_reduction <add>, %0, %cst [1] : vector<32x8x4xf32> to vector<32x4xf32>
    %cst_2 = arith.constant 8.000000e+00 : f32
    %2 = vector.broadcast %cst_2 : f32 to vector<32x4xf32>
    %3 = arith.divf %1, %2 : vector<32x4xf32>
    %c0_3 = arith.constant 0 : index
    %c0_4 = arith.constant 0 : index
    %4 = vector.load %arg2[%c0_3, %c0_4] : memref<4x32xf32, #tpu.memory_space<vmem>>, vector<4x32xf32>
    %cst_5 = arith.constant dense<0.000000e+00> : vector<32x32xf32>
    %5 = tpu.matmul %3, %4, %cst_5 {dimension_numbers = #tpu.dot_dimension_numbers<[1], [0], [0], [1], [0, 0, 1, 1], [], []>} : vector<32x4xf32>, vector<4x32xf32>, vector<32x32xf32> -> vector<32x32xf32>
    %c0_6 = arith.constant 0 : index
    %c0_7 = arith.constant 0 : index
    %6 = vector.load %arg3[%c0_6, %c0_7] : memref<1x32xf32, #tpu.memory_space<vmem>>, vector<1x32xf32>
    %7 = vector.broadcast %6 : vector<1x32xf32> to vector<32x32xf32>
    %8 = arith.addf %5, %7 : vector<32x32xf32>
    %c0_8 = arith.constant 0 : index
    %c0_9 = arith.constant 0 : index
    %9 = vector.load %arg4[%c0_8, %c0_9] : memref<32x8xf32, #tpu.memory_space<vmem>>, vector<32x8xf32>
    %cst_10 = arith.constant dense<0.000000e+00> : vector<32x8xf32>
    %10 = tpu.matmul %8, %9, %cst_10 {dimension_numbers = #tpu.dot_dimension_numbers<[1], [0], [0], [1], [0, 0, 1, 1], [], []>} : vector<32x32xf32>, vector<32x8xf32>, vector<32x8xf32> -> vector<32x8xf32>
    %c0_11 = arith.constant 0 : index
    %c0_12 = arith.constant 0 : index
    %11 = vector.load %arg5[%c0_11, %c0_12] : memref<1x8xf32, #tpu.memory_space<vmem>>, vector<1x8xf32>
    %12 = vector.broadcast %11 : vector<1x8xf32> to vector<32x8xf32>
    %13 = arith.addf %10, %12 : vector<32x8xf32>
    %14 = vector.shape_cast %13 : vector<32x8xf32> to vector<4x8x8xf32>
    %c0_13 = arith.constant 0 : index
    %c0_14 = arith.constant 0 : index
    %15 = vector.load %arg6[%c0_13, %c0_14] : memref<32x8xf32, #tpu.memory_space<vmem>>, vector<32x8xf32>
    %cst_15 = arith.constant dense<0.000000e+00> : vector<32x8xf32>
    %16 = tpu.matmul %8, %15, %cst_15 {dimension_numbers = #tpu.dot_dimension_numbers<[1], [0], [0], [1], [0, 0, 1, 1], [], []>} : vector<32x32xf32>, vector<32x8xf32>, vector<32x8xf32> -> vector<32x8xf32>
    %c0_16 = arith.constant 0 : index
    %c0_17 = arith.constant 0 : index
    %17 = vector.load %arg7[%c0_16, %c0_17] : memref<1x8xf32, #tpu.memory_space<vmem>>, vector<1x8xf32>
    %18 = vector.broadcast %17 : vector<1x8xf32> to vector<32x8xf32>
    %19 = arith.addf %16, %18 : vector<32x8xf32>
    %20 = vector.shape_cast %19 : vector<32x8xf32> to vector<4x8x8xf32>
    "tpu.trace_start"() <{level = 10 : i32, message = "bic,bjc->bij"}> : () -> ()
    %cst_18 = arith.constant dense<0.000000e+00> : vector<4x8x8xf32>
    %21 = tpu.matmul %14, %20, %cst_18 {dimension_numbers = #tpu.dot_dimension_numbers<[2], [2], [1], [1], [0, 0, 0, 1, 1, 1], [0], [0]>} : vector<4x8x8xf32>, vector<4x8x8xf32>, vector<4x8x8xf32> -> vector<4x8x8xf32>
    "tpu.trace_stop"() : () -> ()
    %cst_19 = arith.constant dense<0.000000e+00> : vector<8x8xf32>
    %22 = vector.multi_reduction <add>, %21, %cst_19 [0] : vector<4x8x8xf32> to vector<8x8xf32>
    %cst_20 = arith.constant 3.125000e-02 : f32
    %23 = vector.broadcast %cst_20 : f32 to vector<8x8xf32>
    %24 = arith.mulf %22, %23 : vector<8x8xf32>
    %cst_21 = arith.constant dense<0xFF800000> : vector<8xf32>
    %25 = vector.multi_reduction <maximumf>, %24, %cst_21 [1] : vector<8x8xf32> to vector<8xf32>
    %26 = vector.shape_cast %25 : vector<8xf32> to vector<8x1xf32>
    %27 = vector.broadcast %26 : vector<8x1xf32> to vector<8x8xf32>
    %28 = arith.subf %24, %27 : vector<8x8xf32>
    %29 = math.exp %28 : vector<8x8xf32>
    %cst_22 = arith.constant dense<0.000000e+00> : vector<8xf32>
    %30 = vector.multi_reduction <add>, %29, %cst_22 [1] : vector<8x8xf32> to vector<8xf32>
    %31 = vector.shape_cast %30 : vector<8xf32> to vector<8x1xf32>
    %32 = tpu.reciprocal %31 {approx = true} : vector<8x1xf32> -> vector<8x1xf32>
    %33 = vector.broadcast %32 : vector<8x1xf32> to vector<8x8xf32>
    %34 = arith.mulf %29, %33 : vector<8x8xf32>
    %c0_23 = arith.constant 0 : index
    %c0_24 = arith.constant 0 : index
    %35 = vector.load %arg8[%c0_23, %c0_24] : memref<8x8xf32, #tpu.memory_space<vmem>>, vector<8x8xf32>
    tpu.vector_store %arg8[%c0_23, %c0_24], %34 {strides = array<i32>} : memref<8x8xf32, #tpu.memory_space<vmem>>, vector<8x8xf32>,
    return
  }
  func.func @transform_0(%arg0: i32) -> (i32, i32, i32) {
    %c0_i32 = arith.constant 0 : i32
    %c0_i32_0 = arith.constant 0 : i32
    %c0_i32_1 = arith.constant 0 : i32
    %c0_i32_2 = arith.constant 0 : i32
    return %c0_i32, %c0_i32_0, %c0_i32_1 : i32, i32, i32
  }
  func.func @transform_1(%arg0: i32) -> (i32, i32) {
    %c0_i32 = arith.constant 0 : i32
    %c0_i32_0 = arith.constant 0 : i32
    %c0_i32_1 = arith.constant 0 : i32
    return %c0_i32, %c0_i32_0 : i32, i32
  }
  func.func @transform_2(%arg0: i32) -> (i32, i32) {
    %c0_i32 = arith.constant 0 : i32
    %c0_i32_0 = arith.constant 0 : i32
    %c0_i32_1 = arith.constant 0 : i32
    return %c0_i32, %c0_i32_0 : i32, i32
  }
  func.func @transform_3(%arg0: i32) -> (i32, i32) {
    %c0_i32 = arith.constant 0 : i32
    %c0_i32_0 = arith.constant 0 : i32
    %c0_i32_1 = arith.constant 0 : i32
    return %c0_i32, %c0_i32_0 : i32, i32
  }
  func.func @transform_4(%arg0: i32) -> (i32, i32) {
    %c0_i32 = arith.constant 0 : i32
    %c0_i32_0 = arith.constant 0 : i32
    %c0_i32_1 = arith.constant 0 : i32
    return %c0_i32, %c0_i32_0 : i32, i32
  }
  func.func @transform_5(%arg0: i32) -> (i32, i32) {
    %c0_i32 = arith.constant 0 : i32
    %c0_i32_0 = arith.constant 0 : i32
    %c0_i32_1 = arith.constant 0 : i32
    return %c0_i32, %c0_i32_0 : i32, i32
  }
  func.func @transform_6(%arg0: i32) -> (i32, i32) {
    %c0_i32 = arith.constant 0 : i32
    %c0_i32_0 = arith.constant 0 : i32
    %c0_i32_1 = arith.constant 0 : i32
    return %c0_i32, %c0_i32_0 : i32, i32
  }
  func.func @transform_7(%arg0: i32) -> (i32, i32) {
    %c0_i32 = arith.constant 0 : i32
    %c0_i32_0 = arith.constant 0 : i32
    %c0_i32_1 = arith.constant 0 : i32
    return %c0_i32, %c0_i32_0 : i32, i32
  }
}

</mosaic_0001>

<llo_original>
// kernel: tpu_custom_call.1
$region0: #{tpu_custom_call.1}
  #allocation0 [shape = 'u32[]', space=smem, size = 0x4, offset = 0x4, fixed_abs, tag = 'smem constant byte address 0x4 - core index']
  #allocation1 [shape = 'u32[144,128]{1,0:T(1,128)}', space=vmem, size = 0x12000, scoped, tag = 'internal scratch']
  %s0 = inlined_call_operand.vmem [shape: f32[32,8,4], index: 0, kind: input, shape index: {}]
  %s1 = inlined_call_operand.vmem [shape: f32[4,32], index: 1, kind: input, shape index: {}]
  %s2 = inlined_call_operand.vmem [shape: f32[1,32], index: 2, kind: input, shape index: {}]
  %s3 = inlined_call_operand.vmem [shape: f32[32,8], index: 3, kind: input, shape index: {}]
  %s4 = inlined_call_operand.vmem [shape: f32[1,8], index: 4, kind: input, shape index: {}]
  %s5 = inlined_call_operand.vmem [shape: f32[32,8], index: 5, kind: input, shape index: {}]
  %s6 = inlined_call_operand.vmem [shape: f32[1,8], index: 6, kind: input, shape index: {}]
  %s7 = inlined_call_operand.hbm [shape: f32[8,8], index: 7, kind: output, shape index: {}]
  %s8 = sld [smem:[#allocation0]]
  $region38: #{tpu_custom_call.1} parent=0
    _
  %s10 = ssub.s32 1, %s8
  %s11 = scalar_select 0, %s10, %s8
  $region1: #{tpu_custom_call.1} parent=0
    #allocation2 [shape = 'u8[4096]{0}', space=vmem, size = 0x1000, scoped, tag = 'output window, operand 0, single buffered']
    #allocation3 [shape = 's32[1]{0}', space=sflag, size = 0x4, scoped, tag = 'scoped memory for tpu_custom_call.1']
    %12 = vsyncpa [#allocation3], 0
    // Predicated region
    $region2: #{tpu_custom_call.1} parent=1 // pred_check
      _
    $region3: #{tpu_custom_call.1} parent=1 // pred_check_branch
      %14 = sbr.rel (0) target = $region5
    $region4: #{tpu_custom_call.1} parent=1 // pred_region
      _
    $region5: #{tpu_custom_call.1} parent=1 // pred_fallthru
      _
    // Predicated region
    $region6: #{tpu_custom_call.1} parent=1 // pred_check
      _
    $region7: #{tpu_custom_call.1} parent=1 // pred_check_branch
      %16 = sbr.rel (0) target = $region9
    $region8: #{tpu_custom_call.1} parent=1 // pred_region
      _
    $region9: #{tpu_custom_call.1} parent=1 // pred_fallthru
      _
    // Predicated region
    $region10: #{tpu_custom_call.1} parent=1 // pred_check
      _
    $region11: #{tpu_custom_call.1} parent=1 // pred_check_branch
      %18 = sbr.rel (0) target = $region13
    $region12: #{tpu_custom_call.1} parent=1 // pred_region
      _
    $region13: #{tpu_custom_call.1} parent=1 // pred_fallthru
      _
    // Predicated region
    $region14: #{tpu_custom_call.1} parent=1 // pred_check
      _
    $region15: #{tpu_custom_call.1} parent=1 // pred_check_branch
      %20 = sbr.rel (0) target = $region17
    $region16: #{tpu_custom_call.1} parent=1 // pred_region
      _
    $region17: #{tpu_custom_call.1} parent=1 // pred_fallthru
      _
    // Predicated region
    $region18: #{tpu_custom_call.1} parent=1 // pred_check
      _
    $region19: #{tpu_custom_call.1} parent=1 // pred_check_branch
      %22 = sbr.rel (0) target = $region21
    $region20: #{tpu_custom_call.1} parent=1 // pred_region
      _
    $region21: #{tpu_custom_call.1} parent=1 // pred_fallthru
      _
    // Predicated region
    $region22: #{tpu_custom_call.1} parent=1 // pred_check
      _
    $region23: #{tpu_custom_call.1} parent=1 // pred_check_branch
      %24 = sbr.rel (0) target = $region25
    $region24: #{tpu_custom_call.1} parent=1 // pred_region
      _
    $region25: #{tpu_custom_call.1} parent=1 // pred_fallthru
      _
    // Predicated region
    $region26: #{tpu_custom_call.1} parent=1 // pred_check
      _
    $region27: #{tpu_custom_call.1} parent=1 // pred_check_branch
      %26 = sbr.rel (0) target = $region29
    $region28: #{tpu_custom_call.1} parent=1 // pred_region
      _
    $region29: #{tpu_custom_call.1} parent=1 // pred_fallthru
      _
    %v27 = vld [vmem:[%s0] sm:$0xff]
    %v28 = vld [vmem:[%s0 + $0x8] sm:$0xff]
    %v29 = vld [vmem:[%s0 + $0x10] sm:$0xff]
    %v30 = vld [vmem:[%s0 + $0x18] sm:$0xff]
    %v31 = vld [vmem:[%s0 + $0x20] sm:$0xff]
    %v32 = vld [vmem:[%s0 + $0x28] sm:$0xff]
    %v33 = vld [vmem:[%s0 + $0x30] sm:$0xff]
    %v34 = vld [vmem:[%s0 + $0x38] sm:$0xff]
    %v35 = vld [vmem:[%s0 + $0x40] sm:$0xff]
    %v36 = vld [vmem:[%s0 + $0x48] sm:$0xff]
    %v37 = vld [vmem:[%s0 + $0x50] sm:$0xff]
    %v38 = vld [vmem:[%s0 + $0x58] sm:$0xff]
    %v39 = vld [vmem:[%s0 + $0x60] sm:$0xff]
    %v40 = vld [vmem:[%s0 + $0x68] sm:$0xff]
    %v41 = vld [vmem:[%s0 + $0x70] sm:$0xff]
    %v42 = vld [vmem:[%s0 + $0x78] sm:$0xff]
    %v43 = vld [vmem:[%s0 + $0x80] sm:$0xff]
    %v44 = vld [vmem:[%s0 + $0x88] sm:$0xff]
    %v45 = vld [vmem:[%s0 + $0x90] sm:$0xff]
    %v46 = vld [vmem:[%s0 + $0x98] sm:$0xff]
    %v47 = vld [vmem:[%s0 + $0xa0] sm:$0xff]
    %v48 = vld [vmem:[%s0 + $0xa8] sm:$0xff]
    %v49 = vld [vmem:[%s0 + $0xb0] sm:$0xff]
    %v50 = vld [vmem:[%s0 + $0xb8] sm:$0xff]
    %v51 = vld [vmem:[%s0 + $0xc0] sm:$0xff]
    %v52 = vld [vmem:[%s0 + $0xc8] sm:$0xff]
    %v53 = vld [vmem:[%s0 + $0xd0] sm:$0xff]
    %v54 = vld [vmem:[%s0 + $0xd8] sm:$0xff]
    %v55 = vld [vmem:[%s0 + $0xe0] sm:$0xff]
    %v56 = vld [vmem:[%s0 + $0xe8] sm:$0xff]
    %v57 = vld [vmem:[%s0 + $0xf0] sm:$0xff]
    %v58 = vld [vmem:[%s0 + $0xf8] sm:$0xff]
    %vm59 = vcmask 31744
    %v60 = vsel %vm59, %v27, 0.0
    %v61 = vrot.slane %v60, 4
    %v62 = vadd.f32 %v60, %v61
    %v63 = vrot.slane %v62, 2
    %v64 = vadd.f32 %v62, %v63
    %v65 = vrot.slane %v64, 1
    %v66 = vadd.f32 %v64, %v65
    %v67 = vsel %vm59, %v28, 0.0
    %v68 = vrot.slane %v67, 4
    %v69 = vadd.f32 %v67, %v68
    %v70 = vrot.slane %v69, 2
    %v71 = vadd.f32 %v69, %v70
    %v72 = vrot.slane %v71, 1
    %v73 = vadd.f32 %v71, %v72
    %v74 = vsel %vm59, %v29, 0.0
    %v75 = vrot.slane %v74, 4
    %v76 = vadd.f32 %v74, %v75
    %v77 = vrot.slane %v76, 2
    %v78 = vadd.f32 %v76, %v77
    %v79 = vrot.slane %v78, 1
    %v80 = vadd.f32 %v78, %v79
    %v81 = vsel %vm59, %v30, 0.0
    %v82 = vrot.slane %v81, 4
    %v83 = vadd.f32 %v81, %v82
    %v84 = vrot.slane %v83, 2
    %v85 = vadd.f32 %v83, %v84
    %v86 = vrot.slane %v85, 1
    %v87 = vadd.f32 %v85, %v86
    %v88 = vsel %vm59, %v31, 0.0
    %v89 = vrot.slane %v88, 4
    %v90 = vadd.f32 %v88, %v89
    %v91 = vrot.slane %v90, 2
    %v92 = vadd.f32 %v90, %v91
    %v93 = vrot.slane %v92, 1
    %v94 = vadd.f32 %v92, %v93
    %v95 = vsel %vm59, %v32, 0.0
    %v96 = vrot.slane %v95, 4
    %v97 = vadd.f32 %v95, %v96
    %v98 = vrot.slane %v97, 2
    %v99 = vadd.f32 %v97, %v98
    %v100 = vrot.slane %v99, 1
    %v101 = vadd.f32 %v99, %v100
    %v102 = vsel %vm59, %v33, 0.0
    %v103 = vrot.slane %v102, 4
    %v104 = vadd.f32 %v102, %v103
    %v105 = vrot.slane %v104, 2
    %v106 = vadd.f32 %v104, %v105
    %v107 = vrot.slane %v106, 1
    %v108 = vadd.f32 %v106, %v107
    %v109 = vsel %vm59, %v34, 0.0
    %v110 = vrot.slane %v109, 4
    %v111 = vadd.f32 %v109, %v110
    %v112 = vrot.slane %v111, 2
    %v113 = vadd.f32 %v111, %v112
    %v114 = vrot.slane %v113, 1
    %v115 = vadd.f32 %v113, %v114
    %v116 = vsel %vm59, %v35, 0.0
    %v117 = vrot.slane %v116, 4
    %v118 = vadd.f32 %v116, %v117
    %v119 = vrot.slane %v118, 2
    %v120 = vadd.f32 %v118, %v119
    %v121 = vrot.slane %v120, 1
    %v122 = vadd.f32 %v120, %v121
    %v123 = vsel %vm59, %v36, 0.0
    %v124 = vrot.slane %v123, 4
    %v125 = vadd.f32 %v123, %v124
    %v126 = vrot.slane %v125, 2
    %v127 = vadd.f32 %v125, %v126
    %v128 = vrot.slane %v127, 1
    %v129 = vadd.f32 %v127, %v128
    %v130 = vsel %vm59, %v37, 0.0
    %v131 = vrot.slane %v130, 4
    %v132 = vadd.f32 %v130, %v131
    %v133 = vrot.slane %v132, 2
    %v134 = vadd.f32 %v132, %v133
    %v135 = vrot.slane %v134, 1
    %v136 = vadd.f32 %v134, %v135
    %v137 = vsel %vm59, %v38, 0.0
    %v138 = vrot.slane %v137, 4
    %v139 = vadd.f32 %v137, %v138
    %v140 = vrot.slane %v139, 2
    %v141 = vadd.f32 %v139, %v140
    %v142 = vrot.slane %v141, 1
    %v143 = vadd.f32 %v141, %v142
    %v144 = vsel %vm59, %v39, 0.0
    %v145 = vrot.slane %v144, 4
    %v146 = vadd.f32 %v144, %v145
    %v147 = vrot.slane %v146, 2
    %v148 = vadd.f32 %v146, %v147
    %v149 = vrot.slane %v148, 1
    %v150 = vadd.f32 %v148, %v149
    %v151 = vsel %vm59, %v40, 0.0
    %v152 = vrot.slane %v151, 4
    %v153 = vadd.f32 %v151, %v152
    %v154 = vrot.slane %v153, 2
    %v155 = vadd.f32 %v153, %v154
    %v156 = vrot.slane %v155, 1
    %v157 = vadd.f32 %v155, %v156
    %v158 = vsel %vm59, %v41, 0.0
    %v159 = vrot.slane %v158, 4
    %v160 = vadd.f32 %v158, %v159
    %v161 = vrot.slane %v160, 2
    %v162 = vadd.f32 %v160, %v161
    %v163 = vrot.slane %v162, 1
    %v164 = vadd.f32 %v162, %v163
    %v165 = vsel %vm59, %v42, 0.0
    %v166 = vrot.slane %v165, 4
    %v167 = vadd.f32 %v165, %v166
    %v168 = vrot.slane %v167, 2
    %v169 = vadd.f32 %v167, %v168
    %v170 = vrot.slane %v169, 1
    %v171 = vadd.f32 %v169, %v170
    %v172 = vsel %vm59, %v43, 0.0
    %v173 = vrot.slane %v172, 4
    %v174 = vadd.f32 %v172, %v173
    %v175 = vrot.slane %v174, 2
    %v176 = vadd.f32 %v174, %v175
    %v177 = vrot.slane %v176, 1
    %v178 = vadd.f32 %v176, %v177
    %v179 = vsel %vm59, %v44, 0.0
    %v180 = vrot.slane %v179, 4
    %v181 = vadd.f32 %v179, %v180
    %v182 = vrot.slane %v181, 2
    %v183 = vadd.f32 %v181, %v182
    %v184 = vrot.slane %v183, 1
    %v185 = vadd.f32 %v183, %v184
    %v186 = vsel %vm59, %v45, 0.0
    %v187 = vrot.slane %v186, 4
    %v188 = vadd.f32 %v186, %v187
    %v189 = vrot.slane %v188, 2
    %v190 = vadd.f32 %v188, %v189
    %v191 = vrot.slane %v190, 1
    %v192 = vadd.f32 %v190, %v191
    %v193 = vsel %vm59, %v46, 0.0
    %v194 = vrot.slane %v193, 4
    %v195 = vadd.f32 %v193, %v194
    %v196 = vrot.slane %v195, 2
    %v197 = vadd.f32 %v195, %v196
    %v198 = vrot.slane %v197, 1
    %v199 = vadd.f32 %v197, %v198
    %v200 = vsel %vm59, %v47, 0.0
    %v201 = vrot.slane %v200, 4
    %v202 = vadd.f32 %v200, %v201
    %v203 = vrot.slane %v202, 2
    %v204 = vadd.f32 %v202, %v203
    %v205 = vrot.slane %v204, 1
    %v206 = vadd.f32 %v204, %v205
    %v207 = vsel %vm59, %v48, 0.0
    %v208 = vrot.slane %v207, 4
    %v209 = vadd.f32 %v207, %v208
    %v210 = vrot.slane %v209, 2
    %v211 = vadd.f32 %v209, %v210
    %v212 = vrot.slane %v211, 1
    %v213 = vadd.f32 %v211, %v212
    %v214 = vsel %vm59, %v49, 0.0
    %v215 = vrot.slane %v214, 4
    %v216 = vadd.f32 %v214, %v215
    %v217 = vrot.slane %v216, 2
    %v218 = vadd.f32 %v216, %v217
    %v219 = vrot.slane %v218, 1
    %v220 = vadd.f32 %v218, %v219
    %v221 = vsel %vm59, %v50, 0.0
    %v222 = vrot.slane %v221, 4
    %v223 = vadd.f32 %v221, %v222
    %v224 = vrot.slane %v223, 2
    %v225 = vadd.f32 %v223, %v224
    %v226 = vrot.slane %v225, 1
    %v227 = vadd.f32 %v225, %v226
    %v228 = vsel %vm59, %v51, 0.0
    %v229 = vrot.slane %v228, 4
    %v230 = vadd.f32 %v228, %v229
    %v231 = vrot.slane %v230, 2
    %v232 = vadd.f32 %v230, %v231
    %v233 = vrot.slane %v232, 1
    %v234 = vadd.f32 %v232, %v233
    %v235 = vsel %vm59, %v52, 0.0
    %v236 = vrot.slane %v235, 4
    %v237 = vadd.f32 %v235, %v236
    %v238 = vrot.slane %v237, 2
    %v239 = vadd.f32 %v237, %v238
    %v240 = vrot.slane %v239, 1
    %v241 = vadd.f32 %v239, %v240
    %v242 = vsel %vm59, %v53, 0.0
    %v243 = vrot.slane %v242, 4
    %v244 = vadd.f32 %v242, %v243
    %v245 = vrot.slane %v244, 2
    %v246 = vadd.f32 %v244, %v245
    %v247 = vrot.slane %v246, 1
    %v248 = vadd.f32 %v246, %v247
    %v249 = vsel %vm59, %v54, 0.0
    %v250 = vrot.slane %v249, 4
    %v251 = vadd.f32 %v249, %v250
    %v252 = vrot.slane %v251, 2
    %v253 = vadd.f32 %v251, %v252
    %v254 = vrot.slane %v253, 1
    %v255 = vadd.f32 %v253, %v254
    %v256 = vsel %vm59, %v55, 0.0
    %v257 = vrot.slane %v256, 4
    %v258 = vadd.f32 %v256, %v257
    %v259 = vrot.slane %v258, 2
    %v260 = vadd.f32 %v258, %v259
    %v261 = vrot.slane %v260, 1
    %v262 = vadd.f32 %v260, %v261
    %v263 = vsel %vm59, %v56, 0.0
    %v264 = vrot.slane %v263, 4
    %v265 = vadd.f32 %v263, %v264
    %v266 = vrot.slane %v265, 2
    %v267 = vadd.f32 %v265, %v266
    %v268 = vrot.slane %v267, 1
    %v269 = vadd.f32 %v267, %v268
    %v270 = vsel %vm59, %v57, 0.0
    %v271 = vrot.slane %v270, 4
    %v272 = vadd.f32 %v270, %v271
    %v273 = vrot.slane %v272, 2
    %v274 = vadd.f32 %v272, %v273
    %v275 = vrot.slane %v274, 1
    %v276 = vadd.f32 %v274, %v275
    %v277 = vsel %vm59, %v58, 0.0
    %v278 = vrot.slane %v277, 4
    %v279 = vadd.f32 %v277, %v278
    %v280 = vrot.slane %v279, 2
    %v281 = vadd.f32 %v279, %v280
    %v282 = vrot.slane %v281, 1
    %v283 = vadd.f32 %v281, %v282
    %v284 = vrcp.pop 8.0
    %v285 = vmul.f32 %v66, %v284
    %v286 = vmul.f32 %v73, %v284
    %v287 = vmul.f32 %v80, %v284
    %v288 = vmul.f32 %v87, %v284
    %v289 = vmul.f32 %v94, %v284
    %v290 = vmul.f32 %v101, %v284
    %v291 = vmul.f32 %v108, %v284
    %v292 = vmul.f32 %v115, %v284
    %v293 = vmul.f32 %v122, %v284
    %v294 = vmul.f32 %v129, %v284
    %v295 = vmul.f32 %v136, %v284
    %v296 = vmul.f32 %v143, %v284
    %v297 = vmul.f32 %v150, %v284
    %v298 = vmul.f32 %v157, %v284
    %v299 = vmul.f32 %v164, %v284
    %v300 = vmul.f32 %v171, %v284
    %v301 = vmul.f32 %v178, %v284
    %v302 = vmul.f32 %v185, %v284
    %v303 = vmul.f32 %v192, %v284
    %v304 = vmul.f32 %v199, %v284
    %v305 = vmul.f32 %v206, %v284
    %v306 = vmul.f32 %v213, %v284
    %v307 = vmul.f32 %v220, %v284
    %v308 = vmul.f32 %v227, %v284
    %v309 = vmul.f32 %v234, %v284
    %v310 = vmul.f32 %v241, %v284
    %v311 = vmul.f32 %v248, %v284
    %v312 = vmul.f32 %v255, %v284
    %v313 = vmul.f32 %v262, %v284
    %v314 = vmul.f32 %v269, %v284
    %v315 = vmul.f32 %v276, %v284
    %v316 = vmul.f32 %v283, %v284
    %v317 = vld [vmem:[%s1] sm:$0xf]
    %v318 = vld [vmem:[%s2] sm:$0x1]
    %v320 = vlaneseq
    %v321 = vshrl.u32 %v320, 7
    %v322 = vsub.s32 0, %v321
    %v323 = vrot.slane %v318, %v322
    %vm357 = vcmask 1041409
    %v358 = vsel %vm357, %v286, %v285
    %vm359 = vcmask 1042434
    %v360 = vsel %vm359, %v287, %v358
    %vm361 = vcmask 1043459
    %v362 = vsel %vm361, %v288, %v360
    %vm363 = vcmask 1044484
    %v364 = vsel %vm363, %v289, %v362
    %vm365 = vcmask 1045509
    %v366 = vsel %vm365, %v290, %v364
    %vm367 = vcmask 1046534
    %v368 = vsel %vm367, %v291, %v366
    %vm369 = vcmask 1047559
    %v370 = vsel %vm369, %v292, %v368
    %v371 = vsel %vm357, %v294, %v293
    %v372 = vsel %vm359, %v295, %v371
    %v373 = vsel %vm361, %v296, %v372
    %v374 = vsel %vm363, %v297, %v373
    %v375 = vsel %vm365, %v298, %v374
    %v376 = vsel %vm367, %v299, %v375
    %v377 = vsel %vm369, %v300, %v376
    %v378 = vsel %vm357, %v302, %v301
    %v379 = vsel %vm359, %v303, %v378
    %v380 = vsel %vm361, %v304, %v379
    %v381 = vsel %vm363, %v305, %v380
    %v382 = vsel %vm365, %v306, %v381
    %v383 = vsel %vm367, %v307, %v382
    %v384 = vsel %vm369, %v308, %v383
    %v385 = vsel %vm357, %v310, %v309
    %v386 = vsel %vm359, %v311, %v385
    %v387 = vsel %vm361, %v312, %v386
    %v388 = vsel %vm363, %v313, %v387
    %v389 = vsel %vm365, %v314, %v388
    %v390 = vsel %vm367, %v315, %v389
    %v391 = vsel %vm369, %v316, %v390
    %v392 = vsel %vm59, %v370, 0
    %v394 = vsel %vm59, %v377, 0
    %v396 = vsel %vm59, %v384, 0
    %v398 = vsel %vm59, %v391, 0
    %vm400 = vcmask 1043456
    %v402 = vsel %vm400, %v317, 0
    %404 = vmatprep.subr.mxu0 0.0
    %405 = vmatpush1.msra.mxu0 0.0
    %406 = vmatprep.subr.mxu0 0.0
    %407 = vmatpush1.msra.mxu0 0.0
    %408 = vmatprep.subr.mxu0 0.0
    %409 = vmatpush1.msra.mxu0 0.0
    %410 = vmatprep.subr.mxu0 0.0
    %411 = vmatpush1.msra.mxu0 0.0
    %412 = vmatprep.subr.mxu0 0.0
    %413 = vmatpush1.msra.mxu0 0.0
    %414 = vmatprep.subr.mxu0 0.0
    %415 = vmatpush1.msra.mxu0 0.0
    %416 = vmatprep.subr.mxu0 0.0
    %417 = vmatpush1.msra.mxu0 0.0
    %418 = vmatprep.subr.mxu0 0.0
    %419 = vmatpush1.msra.mxu0 0.0
    %420 = vmatprep.subr.mxu0 0.0
    %421 = vmatpush1.msra.mxu0 0.0
    %422 = vmatprep.subr.mxu0 0.0
    %423 = vmatpush1.msra.mxu0 0.0
    %424 = vmatprep.subr.mxu0 0.0
    %425 = vmatpush1.msra.mxu0 0.0
    %426 = vmatprep.subr.mxu0 0.0
    %427 = vmatpush1.msra.mxu0 0.0
    %428 = vmatprep.subr.mxu0 0.0
    %429 = vmatpush1.msra.mxu0 0.0
    %430 = vmatprep.subr.mxu0 0.0
    %431 = vmatpush1.msra.mxu0 0.0
    %432 = vmatprep.subr.mxu0 0.0
    %433 = vmatpush1.msra.mxu0 0.0
    %434 = vmatprep.subr.mxu0 0.0
    %435 = vmatpush1.msra.mxu0 %v402
    %436 = vmatprep.subr.mxu0 0.0
    %437 = vmatpush2.msra.mxu0 0.0
    %438 = vmatprep.subr.mxu0 0.0
    %439 = vmatpush2.msra.mxu0 0.0
    %440 = vmatprep.subr.mxu0 0.0
    %441 = vmatpush2.msra.mxu0 0.0
    %442 = vmatprep.subr.mxu0 0.0
    %443 = vmatpush2.msra.mxu0 0.0
    %444 = vmatprep.subr.mxu0 0.0
    %445 = vmatpush2.msra.mxu0 0.0
    %446 = vmatprep.subr.mxu0 0.0
    %447 = vmatpush2.msra.mxu0 0.0
    %448 = vmatprep.subr.mxu0 0.0
    %449 = vmatpush2.msra.mxu0 0.0
    %450 = vmatprep.subr.mxu0 0.0
    %451 = vmatpush2.msra.mxu0 0.0
    %452 = vmatprep.subr.mxu0 0.0
    %453 = vmatpush2.msra.mxu0 0.0
    %454 = vmatprep.subr.mxu0 0.0
    %455 = vmatpush2.msra.mxu0 0.0
    %456 = vmatprep.subr.mxu0 0.0
    %457 = vmatpush2.msra.mxu0 0.0
    %458 = vmatprep.subr.mxu0 0.0
    %459 = vmatpush2.msra.mxu0 0.0
    %460 = vmatprep.subr.mxu0 0.0
    %461 = vmatpush2.msra.mxu0 0.0
    %462 = vmatprep.subr.mxu0 0.0
    %463 = vmatpush2.msra.mxu0 0.0
    %464 = vmatprep.subr.mxu0 0.0
    %465 = vmatpush2.msra.mxu0 0.0
    %466 = vmatprep.subr.mxu0 0.0
    %467 = vmatpush2.msra.mxu0 0.0
    %468 = vmatprep.mubr.f32.mxu0 0.0
    %469 = vmatmul.mubr.f32.gmra.mxu0 %v392
    %v470 = vpop.f32.mrf.mxu0
    %v471 = vadd.f32 %v323, %v470
    %v472 = vpop.f32.mrf.mxu0
    %473 = vmatprep.mubr.f32.mxu0 0.0
    %474 = vmatmul.mubr.f32.gmra.mxu0 %v394
    %v475 = vpop.f32.mrf.mxu0
    %v476 = vadd.f32 %v323, %v475
    %v477 = vpop.f32.mrf.mxu0
    %478 = vmatprep.mubr.f32.mxu0 0.0
    %479 = vmatmul.mubr.f32.gmra.mxu0 %v396
    %v480 = vpop.f32.mrf.mxu0
    %v481 = vadd.f32 %v323, %v480
    %v482 = vpop.f32.mrf.mxu0
    %483 = vmatprep.mubr.f32.mxu0 0.0
    %484 = vmatmul.mubr.f32.gmra.mxu0 %v398
    %v485 = vpop.f32.mrf.mxu0
    %v486 = vadd.f32 %v323, %v485
    %v487 = vpop.f32.mrf.mxu0
    %488 = vdwg.mxu0
    %v489 = vld [vmem:[%s3] sm:$0xff]
    %v490 = vld [vmem:[%s3 + $0x8] sm:$0xff]
    %v491 = vld [vmem:[%s3 + $0x10] sm:$0xff]
    %v492 = vld [vmem:[%s3 + $0x18] sm:$0xff]
    %v493 = vld [vmem:[%s4] sm:$0x1]
    %v495 = vlaneseq
    %v496 = vshrl.u32 %v495, 7
    %v497 = vsub.s32 0, %v496
    %v498 = vrot.slane %v493, %v497
    %vm500 = vcmask 261120
    %v502 = vsel %vm500, %v471, 0
    %v505 = vsel %vm500, %v476, 0
    %v508 = vsel %vm500, %v481, 0
    %v511 = vsel %vm500, %v486, 0
    %513 = vmatprep.subr.mxu0 0.0
    %514 = vmatpush1.msra.mxu0 0.0
    %515 = vmatprep.subr.mxu0 0.0
    %516 = vmatpush1.msra.mxu0 0.0
    %517 = vmatprep.subr.mxu0 0.0
    %518 = vmatpush1.msra.mxu0 0.0
    %519 = vmatprep.subr.mxu0 0.0
    %520 = vmatpush1.msra.mxu0 0.0
    %521 = vmatprep.subr.mxu0 0.0
    %522 = vmatpush1.msra.mxu0 0.0
    %523 = vmatprep.subr.mxu0 0.0
    %524 = vmatpush1.msra.mxu0 0.0
    %525 = vmatprep.subr.mxu0 0.0
    %526 = vmatpush1.msra.mxu0 0.0
    %527 = vmatprep.subr.mxu0 0.0
    %528 = vmatpush1.msra.mxu0 0.0
    %529 = vmatprep.subr.mxu0 0.0
    %530 = vmatpush1.msra.mxu0 0.0
    %531 = vmatprep.subr.mxu0 0.0
    %532 = vmatpush1.msra.mxu0 0.0
    %533 = vmatprep.subr.mxu0 0.0
    %534 = vmatpush1.msra.mxu0 0.0
    %535 = vmatprep.subr.mxu0 0.0
    %536 = vmatpush1.msra.mxu0 0.0
    %537 = vmatprep.subr.mxu0 0.0
    %538 = vmatpush1.msra.mxu0 %v492
    %539 = vmatprep.subr.mxu0 0.0
    %540 = vmatpush1.msra.mxu0 %v491
    %541 = vmatprep.subr.mxu0 0.0
    %542 = vmatpush1.msra.mxu0 %v490
    %543 = vmatprep.subr.mxu0 0.0
    %544 = vmatpush1.msra.mxu0 %v489
    %545 = vmatprep.subr.mxu0 0.0
    %546 = vmatpush2.msra.mxu0 0.0
    %547 = vmatprep.subr.mxu0 0.0
    %548 = vmatpush2.msra.mxu0 0.0
    %549 = vmatprep.subr.mxu0 0.0
    %550 = vmatpush2.msra.mxu0 0.0
    %551 = vmatprep.subr.mxu0 0.0
    %552 = vmatpush2.msra.mxu0 0.0
    %553 = vmatprep.subr.mxu0 0.0
    %554 = vmatpush2.msra.mxu0 0.0
    %555 = vmatprep.subr.mxu0 0.0
    %556 = vmatpush2.msra.mxu0 0.0
    %557 = vmatprep.subr.mxu0 0.0
    %558 = vmatpush2.msra.mxu0 0.0
    %559 = vmatprep.subr.mxu0 0.0
    %560 = vmatpush2.msra.mxu0 0.0
    %561 = vmatprep.subr.mxu0 0.0
    %562 = vmatpush2.msra.mxu0 0.0
    %563 = vmatprep.subr.mxu0 0.0
    %564 = vmatpush2.msra.mxu0 0.0
    %565 = vmatprep.subr.mxu0 0.0
    %566 = vmatpush2.msra.mxu0 0.0
    %567 = vmatprep.subr.mxu0 0.0
    %568 = vmatpush2.msra.mxu0 0.0
    %569 = vmatprep.subr.mxu0 0.0
    %570 = vmatpush2.msra.mxu0 0.0
    %571 = vmatprep.subr.mxu0 0.0
    %572 = vmatpush2.msra.mxu0 0.0
    %573 = vmatprep.subr.mxu0 0.0
    %574 = vmatpush2.msra.mxu0 0.0
    %575 = vmatprep.subr.mxu0 0.0
    %576 = vmatpush2.msra.mxu0 0.0
    %577 = vmatprep.mubr.f32.mxu0 0.0
    %578 = vmatmul.mubr.f32.gmra.mxu0 %v502
    %v579 = vpop.f32.mrf.mxu0
    %v580 = vadd.f32 %v498, %v579
    %v581 = vpop.f32.mrf.mxu0
    %582 = vmatprep.mubr.f32.mxu0 0.0
    %583 = vmatmul.mubr.f32.gmra.mxu0 %v505
    %v584 = vpop.f32.mrf.mxu0
    %v585 = vadd.f32 %v498, %v584
    %v586 = vpop.f32.mrf.mxu0
    %587 = vmatprep.mubr.f32.mxu0 0.0
    %588 = vmatmul.mubr.f32.gmra.mxu0 %v508
    %v589 = vpop.f32.mrf.mxu0
    %v590 = vadd.f32 %v498, %v589
    %v591 = vpop.f32.mrf.mxu0
    %592 = vmatprep.mubr.f32.mxu0 0.0
    %593 = vmatmul.mubr.f32.gmra.mxu0 %v511
    %v594 = vpop.f32.mrf.mxu0
    %v595 = vadd.f32 %v498, %v594
    %v596 = vpop.f32.mrf.mxu0
    %597 = vdwg.mxu0
    %v598 = vld [vmem:[%s5] sm:$0xff]
    %v599 = vld [vmem:[%s5 + $0x8] sm:$0xff]
    %v600 = vld [vmem:[%s5 + $0x10] sm:$0xff]
    %v601 = vld [vmem:[%s5 + $0x18] sm:$0xff]
    %v602 = vld [vmem:[%s6] sm:$0x1]
    %v604 = vlaneseq
    %v605 = vshrl.u32 %v604, 7
    %v606 = vsub.s32 0, %v605
    %v607 = vrot.slane %v602, %v606
    %609 = vmatprep.subr.mxu0 0.0
    %610 = vmatpush1.msra.mxu0 0.0
    %611 = vmatprep.subr.mxu0 0.0
    %612 = vmatpush1.msra.mxu0 0.0
    %613 = vmatprep.subr.mxu0 0.0
    %614 = vmatpush1.msra.mxu0 0.0
    %615 = vmatprep.subr.mxu0 0.0
    %616 = vmatpush1.msra.mxu0 0.0
    %617 = vmatprep.subr.mxu0 0.0
    %618 = vmatpush1.msra.mxu0 0.0
    %619 = vmatprep.subr.mxu0 0.0
    %620 = vmatpush1.msra.mxu0 0.0
    %621 = vmatprep.subr.mxu0 0.0
    %622 = vmatpush1.msra.mxu0 0.0
    %623 = vmatprep.subr.mxu0 0.0
    %624 = vmatpush1.msra.mxu0 0.0
    %625 = vmatprep.subr.mxu0 0.0
    %626 = vmatpush1.msra.mxu0 0.0
    %627 = vmatprep.subr.mxu0 0.0
    %628 = vmatpush1.msra.mxu0 0.0
    %629 = vmatprep.subr.mxu0 0.0
    %630 = vmatpush1.msra.mxu0 0.0
    %631 = vmatprep.subr.mxu0 0.0
    %632 = vmatpush1.msra.mxu0 0.0
    %633 = vmatprep.subr.mxu0 0.0
    %634 = vmatpush1.msra.mxu0 %v601
    %635 = vmatprep.subr.mxu0 0.0
    %636 = vmatpush1.msra.mxu0 %v600
    %637 = vmatprep.subr.mxu0 0.0
    %638 = vmatpush1.msra.mxu0 %v599
    %639 = vmatprep.subr.mxu0 0.0
    %640 = vmatpush1.msra.mxu0 %v598
    %641 = vmatprep.subr.mxu0 0.0
    %642 = vmatpush2.msra.mxu0 0.0
    %643 = vmatprep.subr.mxu0 0.0
    %644 = vmatpush2.msra.mxu0 0.0
    %645 = vmatprep.subr.mxu0 0.0
    %646 = vmatpush2.msra.mxu0 0.0
    %647 = vmatprep.subr.mxu0 0.0
    %648 = vmatpush2.msra.mxu0 0.0
    %649 = vmatprep.subr.mxu0 0.0
    %650 = vmatpush2.msra.mxu0 0.0
    %651 = vmatprep.subr.mxu0 0.0
    %652 = vmatpush2.msra.mxu0 0.0
    %653 = vmatprep.subr.mxu0 0.0
    %654 = vmatpush2.msra.mxu0 0.0
    %655 = vmatprep.subr.mxu0 0.0
    %656 = vmatpush2.msra.mxu0 0.0
    %657 = vmatprep.subr.mxu0 0.0
    %658 = vmatpush2.msra.mxu0 0.0
    %659 = vmatprep.subr.mxu0 0.0
    %660 = vmatpush2.msra.mxu0 0.0
    %661 = vmatprep.subr.mxu0 0.0
    %662 = vmatpush2.msra.mxu0 0.0
    %663 = vmatprep.subr.mxu0 0.0
    %664 = vmatpush2.msra.mxu0 0.0
    %665 = vmatprep.subr.mxu0 0.0
    %666 = vmatpush2.msra.mxu0 0.0
    %667 = vmatprep.subr.mxu0 0.0
    %668 = vmatpush2.msra.mxu0 0.0
    %669 = vmatprep.subr.mxu0 0.0
    %670 = vmatpush2.msra.mxu0 0.0
    %671 = vmatprep.subr.mxu0 0.0
    %672 = vmatpush2.msra.mxu0 0.0
    %673 = vmatprep.mubr.f32.mxu0 0.0
    %674 = vmatmul.mubr.f32.gmra.mxu0 %v502
    %v675 = vpop.f32.mrf.mxu0
    %v676 = vadd.f32 %v607, %v675
    %v677 = vpop.f32.mrf.mxu0
    %678 = vmatprep.mubr.f32.mxu0 0.0
    %679 = vmatmul.mubr.f32.gmra.mxu0 %v505
    %v680 = vpop.f32.mrf.mxu0
    %v681 = vadd.f32 %v607, %v680
    %v682 = vpop.f32.mrf.mxu0
    %683 = vmatprep.mubr.f32.mxu0 0.0
    %684 = vmatmul.mubr.f32.gmra.mxu0 %v508
    %v685 = vpop.f32.mrf.mxu0
    %v686 = vadd.f32 %v607, %v685
    %v687 = vpop.f32.mrf.mxu0
    %688 = vmatprep.mubr.f32.mxu0 0.0
    %689 = vmatmul.mubr.f32.gmra.mxu0 %v511
    %v690 = vpop.f32.mrf.mxu0
    %v691 = vadd.f32 %v607, %v690
    %v692 = vpop.f32.mrf.mxu0
    %693 = vdwg.mxu0
    %vm694 = vcmask 64512
    %v696 = vsel %vm694, %v580, 0
    %v699 = vsel %vm694, %v676, 0
    %701 = vmatprep.subr.mxu0 0.0
    %702 = vmatpush1.xpose.msra.mxu0 0.0
    %703 = vmatprep.subr.mxu0 0.0
    %704 = vmatpush1.xpose.msra.mxu0 0.0
    %705 = vmatprep.subr.mxu0 0.0
    %706 = vmatpush1.xpose.msra.mxu0 0.0
    %707 = vmatprep.subr.mxu0 0.0
    %708 = vmatpush1.xpose.msra.mxu0 0.0
    %709 = vmatprep.subr.mxu0 0.0
    %710 = vmatpush1.xpose.msra.mxu0 0.0
    %711 = vmatprep.subr.mxu0 0.0
    %712 = vmatpush1.xpose.msra.mxu0 0.0
    %713 = vmatprep.subr.mxu0 0.0
    %714 = vmatpush1.xpose.msra.mxu0 0.0
    %715 = vmatprep.subr.mxu0 0.0
    %716 = vmatpush1.xpose.msra.mxu0 0.0
    %717 = vmatprep.subr.mxu0 0.0
    %718 = vmatpush1.xpose.msra.mxu0 0.0
    %719 = vmatprep.subr.mxu0 0.0
    %720 = vmatpush1.xpose.msra.mxu0 0.0
    %721 = vmatprep.subr.mxu0 0.0
    %722 = vmatpush1.xpose.msra.mxu0 0.0
    %723 = vmatprep.subr.mxu0 0.0
    %724 = vmatpush1.xpose.msra.mxu0 0.0
    %725 = vmatprep.subr.mxu0 0.0
    %726 = vmatpush1.xpose.msra.mxu0 0.0
    %727 = vmatprep.subr.mxu0 0.0
    %728 = vmatpush1.xpose.msra.mxu0 0.0
    %729 = vmatprep.subr.mxu0 0.0
    %730 = vmatpush1.xpose.msra.mxu0 0.0
    %731 = vmatprep.subr.mxu0 0.0
    %732 = vmatpush1.xpose.msra.mxu0 %v699
    %733 = vmatprep.subr.mxu0 0.0
    %734 = vmatpush2.xpose.msra.mxu0 0.0
    %735 = vmatprep.subr.mxu0 0.0
    %736 = vmatpush2.xpose.msra.mxu0 0.0
    %737 = vmatprep.subr.mxu0 0.0
    %738 = vmatpush2.xpose.msra.mxu0 0.0
    %739 = vmatprep.subr.mxu0 0.0
    %740 = vmatpush2.xpose.msra.mxu0 0.0
    %741 = vmatprep.subr.mxu0 0.0
    %742 = vmatpush2.xpose.msra.mxu0 0.0
    %743 = vmatprep.subr.mxu0 0.0
    %744 = vmatpush2.xpose.msra.mxu0 0.0
    %745 = vmatprep.subr.mxu0 0.0
    %746 = vmatpush2.xpose.msra.mxu0 0.0
    %747 = vmatprep.subr.mxu0 0.0
    %748 = vmatpush2.xpose.msra.mxu0 0.0
    %749 = vmatprep.subr.mxu0 0.0
    %750 = vmatpush2.xpose.msra.mxu0 0.0
    %751 = vmatprep.subr.mxu0 0.0
    %752 = vmatpush2.xpose.msra.mxu0 0.0
    %753 = vmatprep.subr.mxu0 0.0
    %754 = vmatpush2.xpose.msra.mxu0 0.0
    %755 = vmatprep.subr.mxu0 0.0
    %756 = vmatpush2.xpose.msra.mxu0 0.0
    %757 = vmatprep.subr.mxu0 0.0
    %758 = vmatpush2.xpose.msra.mxu0 0.0
    %759 = vmatprep.subr.mxu0 0.0
    %760 = vmatpush2.xpose.msra.mxu0 0.0
    %761 = vmatprep.subr.mxu0 0.0
    %762 = vmatpush2.xpose.msra.mxu0 0.0
    %763 = vmatprep.subr.mxu0 0.0
    %764 = vmatpush2.xpose.msra.mxu0 0.0
    %765 = vmatprep.mubr.f32.mxu0 0.0
    %766 = vmatmul.mubr.f32.gmra.mxu0 %v696
    %v767 = vpop.f32.mrf.mxu0
    %v768 = vadd.f32 0.0, %v767
    %v769 = vpop.f32.mrf.mxu0
    %770 = vdwg.mxu0
    %v772 = vsel %vm694, %v585, 0
    %v775 = vsel %vm694, %v681, 0
    %777 = vmatprep.subr.mxu0 0.0
    %778 = vmatpush1.xpose.msra.mxu0 0.0
    %779 = vmatprep.subr.mxu0 0.0
    %780 = vmatpush1.xpose.msra.mxu0 0.0
    %781 = vmatprep.subr.mxu0 0.0
    %782 = vmatpush1.xpose.msra.mxu0 0.0
    %783 = vmatprep.subr.mxu0 0.0
    %784 = vmatpush1.xpose.msra.mxu0 0.0
    %785 = vmatprep.subr.mxu0 0.0
    %786 = vmatpush1.xpose.msra.mxu0 0.0
    %787 = vmatprep.subr.mxu0 0.0
    %788 = vmatpush1.xpose.msra.mxu0 0.0
    %789 = vmatprep.subr.mxu0 0.0
    %790 = vmatpush1.xpose.msra.mxu0 0.0
    %791 = vmatprep.subr.mxu0 0.0
    %792 = vmatpush1.xpose.msra.mxu0 0.0
    %793 = vmatprep.subr.mxu0 0.0
    %794 = vmatpush1.xpose.msra.mxu0 0.0
    %795 = vmatprep.subr.mxu0 0.0
    %796 = vmatpush1.xpose.msra.mxu0 0.0
    %797 = vmatprep.subr.mxu0 0.0
    %798 = vmatpush1.xpose.msra.mxu0 0.0
    %799 = vmatprep.subr.mxu0 0.0
    %800 = vmatpush1.xpose.msra.mxu0 0.0
    %801 = vmatprep.subr.mxu0 0.0
    %802 = vmatpush1.xpose.msra.mxu0 0.0
    %803 = vmatprep.subr.mxu0 0.0
    %804 = vmatpush1.xpose.msra.mxu0 0.0
    %805 = vmatprep.subr.mxu0 0.0
    %806 = vmatpush1.xpose.msra.mxu0 0.0
    %807 = vmatprep.subr.mxu0 0.0
    %808 = vmatpush1.xpose.msra.mxu0 %v775
    %809 = vmatprep.subr.mxu0 0.0
    %810 = vmatpush2.xpose.msra.mxu0 0.0
    %811 = vmatprep.subr.mxu0 0.0
    %812 = vmatpush2.xpose.msra.mxu0 0.0
    %813 = vmatprep.subr.mxu0 0.0
    %814 = vmatpush2.xpose.msra.mxu0 0.0
    %815 = vmatprep.subr.mxu0 0.0
    %816 = vmatpush2.xpose.msra.mxu0 0.0
    %817 = vmatprep.subr.mxu0 0.0
    %818 = vmatpush2.xpose.msra.mxu0 0.0
    %819 = vmatprep.subr.mxu0 0.0
    %820 = vmatpush2.xpose.msra.mxu0 0.0
    %821 = vmatprep.subr.mxu0 0.0
    %822 = vmatpush2.xpose.msra.mxu0 0.0
    %823 = vmatprep.subr.mxu0 0.0
    %824 = vmatpush2.xpose.msra.mxu0 0.0
    %825 = vmatprep.subr.mxu0 0.0
    %826 = vmatpush2.xpose.msra.mxu0 0.0
    %827 = vmatprep.subr.mxu0 0.0
    %828 = vmatpush2.xpose.msra.mxu0 0.0
    %829 = vmatprep.subr.mxu0 0.0
    %830 = vmatpush2.xpose.msra.mxu0 0.0
    %831 = vmatprep.subr.mxu0 0.0
    %832 = vmatpush2.xpose.msra.mxu0 0.0
    %833 = vmatprep.subr.mxu0 0.0
    %834 = vmatpush2.xpose.msra.mxu0 0.0
    %835 = vmatprep.subr.mxu0 0.0
    %836 = vmatpush2.xpose.msra.mxu0 0.0
    %837 = vmatprep.subr.mxu0 0.0
    %838 = vmatpush2.xpose.msra.mxu0 0.0
    %839 = vmatprep.subr.mxu0 0.0
    %840 = vmatpush2.xpose.msra.mxu0 0.0
    %841 = vmatprep.mubr.f32.mxu0 0.0
    %842 = vmatmul.mubr.f32.gmra.mxu0 %v772
    %v843 = vpop.f32.mrf.mxu0
    %v844 = vadd.f32 0.0, %v843
    %v845 = vpop.f32.mrf.mxu0
    %846 = vdwg.mxu0
    %v848 = vsel %vm694, %v590, 0
    %v851 = vsel %vm694, %v686, 0
    %853 = vmatprep.subr.mxu0 0.0
    %854 = vmatpush1.xpose.msra.mxu0 0.0
    %855 = vmatprep.subr.mxu0 0.0
    %856 = vmatpush1.xpose.msra.mxu0 0.0
    %857 = vmatprep.subr.mxu0 0.0
    %858 = vmatpush1.xpose.msra.mxu0 0.0
    %859 = vmatprep.subr.mxu0 0.0
    %860 = vmatpush1.xpose.msra.mxu0 0.0
    %861 = vmatprep.subr.mxu0 0.0
    %862 = vmatpush1.xpose.msra.mxu0 0.0
    %863 = vmatprep.subr.mxu0 0.0
    %864 = vmatpush1.xpose.msra.mxu0 0.0
    %865 = vmatprep.subr.mxu0 0.0
    %866 = vmatpush1.xpose.msra.mxu0 0.0
    %867 = vmatprep.subr.mxu0 0.0
    %868 = vmatpush1.xpose.msra.mxu0 0.0
    %869 = vmatprep.subr.mxu0 0.0
    %870 = vmatpush1.xpose.msra.mxu0 0.0
    %871 = vmatprep.subr.mxu0 0.0
    %872 = vmatpush1.xpose.msra.mxu0 0.0
    %873 = vmatprep.subr.mxu0 0.0
    %874 = vmatpush1.xpose.msra.mxu0 0.0
    %875 = vmatprep.subr.mxu0 0.0
    %876 = vmatpush1.xpose.msra.mxu0 0.0
    %877 = vmatprep.subr.mxu0 0.0
    %878 = vmatpush1.xpose.msra.mxu0 0.0
    %879 = vmatprep.subr.mxu0 0.0
    %880 = vmatpush1.xpose.msra.mxu0 0.0
    %881 = vmatprep.subr.mxu0 0.0
    %882 = vmatpush1.xpose.msra.mxu0 0.0
    %883 = vmatprep.subr.mxu0 0.0
    %884 = vmatpush1.xpose.msra.mxu0 %v851
    %885 = vmatprep.subr.mxu0 0.0
    %886 = vmatpush2.xpose.msra.mxu0 0.0
    %887 = vmatprep.subr.mxu0 0.0
    %888 = vmatpush2.xpose.msra.mxu0 0.0
    %889 = vmatprep.subr.mxu0 0.0
    %890 = vmatpush2.xpose.msra.mxu0 0.0
    %891 = vmatprep.subr.mxu0 0.0
    %892 = vmatpush2.xpose.msra.mxu0 0.0
    %893 = vmatprep.subr.mxu0 0.0
    %894 = vmatpush2.xpose.msra.mxu0 0.0
    %895 = vmatprep.subr.mxu0 0.0
    %896 = vmatpush2.xpose.msra.mxu0 0.0
    %897 = vmatprep.subr.mxu0 0.0
    %898 = vmatpush2.xpose.msra.mxu0 0.0
    %899 = vmatprep.subr.mxu0 0.0
    %900 = vmatpush2.xpose.msra.mxu0 0.0
    %901 = vmatprep.subr.mxu0 0.0
    %902 = vmatpush2.xpose.msra.mxu0 0.0
    %903 = vmatprep.subr.mxu0 0.0
    %904 = vmatpush2.xpose.msra.mxu0 0.0
    %905 = vmatprep.subr.mxu0 0.0
    %906 = vmatpush2.xpose.msra.mxu0 0.0
    %907 = vmatprep.subr.mxu0 0.0
    %908 = vmatpush2.xpose.msra.mxu0 0.0
    %909 = vmatprep.subr.mxu0 0.0
    %910 = vmatpush2.xpose.msra.mxu0 0.0
    %911 = vmatprep.subr.mxu0 0.0
    %912 = vmatpush2.xpose.msra.mxu0 0.0
    %913 = vmatprep.subr.mxu0 0.0
    %914 = vmatpush2.xpose.msra.mxu0 0.0
    %915 = vmatprep.subr.mxu0 0.0
    %916 = vmatpush2.xpose.msra.mxu0 0.0
    %917 = vmatprep.mubr.f32.mxu0 0.0
    %918 = vmatmul.mubr.f32.gmra.mxu0 %v848
    %v919 = vpop.f32.mrf.mxu0
    %v920 = vadd.f32 0.0, %v919
    %v921 = vpop.f32.mrf.mxu0
    %922 = vdwg.mxu0
    %v924 = vsel %vm694, %v595, 0
    %v927 = vsel %vm694, %v691, 0
    %929 = vmatprep.subr.mxu0 0.0
    %930 = vmatpush1.xpose.msra.mxu0 0.0
    %931 = vmatprep.subr.mxu0 0.0
    %932 = vmatpush1.xpose.msra.mxu0 0.0
    %933 = vmatprep.subr.mxu0 0.0
    %934 = vmatpush1.xpose.msra.mxu0 0.0
    %935 = vmatprep.subr.mxu0 0.0
    %936 = vmatpush1.xpose.msra.mxu0 0.0
    %937 = vmatprep.subr.mxu0 0.0
    %938 = vmatpush1.xpose.msra.mxu0 0.0
    %939 = vmatprep.subr.mxu0 0.0
    %940 = vmatpush1.xpose.msra.mxu0 0.0
    %941 = vmatprep.subr.mxu0 0.0
    %942 = vmatpush1.xpose.msra.mxu0 0.0
    %943 = vmatprep.subr.mxu0 0.0
    %944 = vmatpush1.xpose.msra.mxu0 0.0
    %945 = vmatprep.subr.mxu0 0.0
    %946 = vmatpush1.xpose.msra.mxu0 0.0
    %947 = vmatprep.subr.mxu0 0.0
    %948 = vmatpush1.xpose.msra.mxu0 0.0
    %949 = vmatprep.subr.mxu0 0.0
    %950 = vmatpush1.xpose.msra.mxu0 0.0
    %951 = vmatprep.subr.mxu0 0.0
    %952 = vmatpush1.xpose.msra.mxu0 0.0
    %953 = vmatprep.subr.mxu0 0.0
    %954 = vmatpush1.xpose.msra.mxu0 0.0
    %955 = vmatprep.subr.mxu0 0.0
    %956 = vmatpush1.xpose.msra.mxu0 0.0
    %957 = vmatprep.subr.mxu0 0.0
    %958 = vmatpush1.xpose.msra.mxu0 0.0
    %959 = vmatprep.subr.mxu0 0.0
    %960 = vmatpush1.xpose.msra.mxu0 %v927
    %961 = vmatprep.subr.mxu0 0.0
    %962 = vmatpush2.xpose.msra.mxu0 0.0
    %963 = vmatprep.subr.mxu0 0.0
    %964 = vmatpush2.xpose.msra.mxu0 0.0
    %965 = vmatprep.subr.mxu0 0.0
    %966 = vmatpush2.xpose.msra.mxu0 0.0
    %967 = vmatprep.subr.mxu0 0.0
    %968 = vmatpush2.xpose.msra.mxu0 0.0
    %969 = vmatprep.subr.mxu0 0.0
    %970 = vmatpush2.xpose.msra.mxu0 0.0
    %971 = vmatprep.subr.mxu0 0.0
    %972 = vmatpush2.xpose.msra.mxu0 0.0
    %973 = vmatprep.subr.mxu0 0.0
    %974 = vmatpush2.xpose.msra.mxu0 0.0
    %975 = vmatprep.subr.mxu0 0.0
    %976 = vmatpush2.xpose.msra.mxu0 0.0
    %977 = vmatprep.subr.mxu0 0.0
    %978 = vmatpush2.xpose.msra.mxu0 0.0
    %979 = vmatprep.subr.mxu0 0.0
    %980 = vmatpush2.xpose.msra.mxu0 0.0
    %981 = vmatprep.subr.mxu0 0.0
    %982 = vmatpush2.xpose.msra.mxu0 0.0
    %983 = vmatprep.subr.mxu0 0.0
    %984 = vmatpush2.xpose.msra.mxu0 0.0
    %985 = vmatprep.subr.mxu0 0.0
    %986 = vmatpush2.xpose.msra.mxu0 0.0
    %987 = vmatprep.subr.mxu0 0.0
    %988 = vmatpush2.xpose.msra.mxu0 0.0
    %989 = vmatprep.subr.mxu0 0.0
    %990 = vmatpush2.xpose.msra.mxu0 0.0
    %991 = vmatprep.subr.mxu0 0.0
    %992 = vmatpush2.xpose.msra.mxu0 0.0
    %993 = vmatprep.mubr.f32.mxu0 0.0
    %994 = vmatmul.mubr.f32.gmra.mxu0 %v924
    %v995 = vpop.f32.mrf.mxu0
    %v996 = vadd.f32 0.0, %v995
    %v997 = vpop.f32.mrf.mxu0
    %998 = vdwg.mxu0
    %v999 = vsel %vm694, %v768, 0.0
    %v1000 = vsel %vm694, %v844, 0.0
    %v1001 = vadd.f32 %v999, %v1000
    %v1002 = vsel %vm694, %v920, 0.0
    %v1003 = vadd.f32 %v1001, %v1002
    %v1004 = vsel %vm694, %v996, 0.0
    %v1005 = vadd.f32 %v1003, %v1004
    %v1006 = vmul.f32 %v1005, 0.03125
    %v1007 = vsel %vm694, %v1006, -inf
    %1008 = vmax.xlane.f32.xlu0 %v1007
    %v1009 = vpop.xlane.xlu0 %1008
    %v1010 = vsub.f32 %v1006, %v1009
    %v1011 = vmul.f32 %v1010, 1.442695
    %v1012 = vpow.pop %v1011
    %v1013 = vsel %vm694, %v1012, 0.0
    %1014 = vadd.xlane.f32.xlu0 %v1013
    %v1015 = vpop.xlane.xlu0 %1014
    %v1016 = vrcp.pop %v1015
    %v1017 = vmul.f32 %v1012, %v1016
    %1018 = vst.msk [vmem:[#allocation2] sm:$0xff] %vm694, %v1017
    // Predicated region
    $region30: #{tpu_custom_call.1} parent=1 // pred_check
      _
    $region31: #{tpu_custom_call.1} parent=1 // pred_check_branch
      %1020 = sbr.rel (0) target = $region33
    $region32: #{tpu_custom_call.1} parent=1 // pred_region
      %s1022 = ssub.s32 128, 128
      %1023 = vsyncadd [#allocation3], %s1022
      %s1025 = sshll.u32 [#allocation2], 4
      %s1026 = int_to_ptr.vmem [resolvable:$true] %s1025
      %1028 = dma.vmem_to_hbm [thread:$0]  %s1026, 128, %s7, [#allocation3]
    $region33: #{tpu_custom_call.1} parent=1 // pred_fallthru
      _
    // Predicated region
    $region34: #{tpu_custom_call.1} parent=1 // pred_check
      _
    $region35: #{tpu_custom_call.1} parent=1 // pred_check_branch
      %1030 = sbr.rel (0) target = $region37
    $region36: #{tpu_custom_call.1} parent=1 // pred_region
      %1031 = dma.done [#allocation3], 128
    $region37: #{tpu_custom_call.1} parent=1 // pred_fallthru
      _
    %1032 = vsyncpa [#allocation3], 1

</llo_original>
